<compile_context>
chip_gen: v7x
topology: tpu7x:2x2x1
jax: 0.10.0
libtpu: 0.0.40
codegen_flags: <defaults>
</compile_context>

<pallas_src>
import functools

import jax
import jax.numpy as jnp
from jax import lax
from jax.experimental import pallas as pl
from jax.experimental.pallas import tpu as pltpu

EPS = 1e-5  # PyTorch BatchNorm2d default eps


# ------------------------------ small helpers --------------------------------
def _round_up(x, m):
    return (x + m - 1) // m * m


def _padding_for(kernel_size):
    if kernel_size == 8:
        return 3
    if kernel_size == 4:
        return 1
    return kernel_size // 2


def _vmem_limit_bytes():
    # Size the scoped-VMEM budget from the actual chip (v7x has only 64 MiB/TC,
    # v5e/v6e have 128 MiB); keep ~25% headroom for the compiler.
    try:
        cap = int(pltpu.get_tpu_info().vmem_capacity_bytes)
    except Exception:  # pragma: no cover - conservative fallback
        cap = 128 * 1024 * 1024
    return max(32 * 1024 * 1024, (cap * 3) // 4)


def _effective_tile(P, tile_p):
    return max(8, _round_up(min(tile_p, _round_up(P, 8)), 8))


# ----------------------------- Pallas kernels --------------------------------
def _matmul_stats_kernel(p_ref, w_ref, y_ref, stats_ref):
    """Pass 1: y = patches @ W on the MXU (f32 accumulation), plus this tile's
    per-channel sum / sum-of-squares written to the tile's OWN stats rows
    (no resident accumulator -> grid axis is fully 'parallel')."""
    y = jnp.dot(p_ref[...], w_ref[...], preferred_element_type=jnp.float32)
    y_ref[...] = y.astype(y_ref.dtype)
    stats_ref[...] = jnp.zeros_like(stats_ref)          # 8-sublane block
    stats_ref[0:1, :] = jnp.sum(y, axis=0, keepdims=True)
    stats_ref[1:2, :] = jnp.sum(y * y, axis=0, keepdims=True)


def _affine_act_kernel(y_ref, aff_ref, o_ref):
    """Pass 2a: o = y*scale + shift with per-lane ReLU mask (aff rows: 0=scale,
    1=shift, 2=relu-mask).  Elementwise math kept in f32 (v5e VPU)."""
    y = y_ref[...].astype(jnp.float32)
    aff = aff_ref[...]
    yn = y * aff[0:1, :] + aff[1:2, :]
    o_ref[...] = jnp.where(aff[2:3, :] > 0.0, jnp.maximum(yn, 0.0), yn).astype(o_ref.dtype)


def _affine_add_relu_kernel(y_ref, aff_ref, id_ref, o_ref):
    """Pass 2b (final): o = relu(y*scale + shift + identity)."""
    y = y_ref[...].astype(jnp.float32)
    aff = aff_ref[...]
    idv = id_ref[...].astype(jnp.float32)
    o_ref[...] = jnp.maximum(y * aff[0:1, :] + aff[1:2, :] + idv, 0.0).astype(o_ref.dtype)


# ----------------------------- pallas_call wrappers ---------------------------
def _conv_matmul(patches, w_mat, *, tile_p, y_dtype, vmem_limit):
    """Tiled patches @ w_mat.  Returns y (Pp, Ctot) and reduced (2, Ctot) stats."""
    P, K = patches.shape
    Ctot = w_mat.shape[1]
    patches = patches.astype(w_mat.dtype)
    Pp = _round_up(P, tile_p)
    if Pp != P:
        # Zero rows contribute nothing to sum / sum_sq; mean uses 1/P downstream.
        patches = jnp.pad(patches, ((0, Pp - P), (0, 0)))
    nt = Pp // tile_p
    # K left unpadded: the block covers the full K extent ("equal full dim" rule),
    # avoiding an extra padded HBM copy of the (already amplified) patch matrix.
    y, part = pl.pallas_call(
        _matmul_stats_kernel,
        out_shape=(jax.ShapeDtypeStruct((Pp, Ctot), y_dtype),
                   jax.ShapeDtypeStruct((nt * 8, Ctot), jnp.float32)),
        grid=(nt,),
        in_specs=[pl.BlockSpec((tile_p, K), lambda i: (i, 0)),
                  pl.BlockSpec((K, Ctot), lambda i: (0, 0))],
        out_specs=(pl.BlockSpec((tile_p, Ctot), lambda i: (i, 0)),
                   pl.BlockSpec((8, Ctot), lambda i: (i, 0))),
        compiler_params=pltpu.CompilerParams(
            dimension_semantics=("parallel",),      # v7x: both TCs split row tiles
            vmem_limit_bytes=vmem_limit),
    )(patches, w_mat)
    stats = jnp.sum(part.reshape(nt, 8, Ctot), axis=0)[:2]   # tiny XLA reduce
    return y, stats


def _bn_affine(stats, gamma, beta, n_valid, rmask=None):
    """Wrapper-side (tiny) BN train-stats -> per-lane scale/shift (+relu mask)."""
    inv_n = 1.0 / float(n_valid)
    mean = stats[0] * inv_n
    var = stats[1] * inv_n - mean * mean
    scale = gamma * lax.rsqrt(var + EPS)
    shift = beta - mean * scale
    rows = [scale, shift] + ([rmask] if rmask is not None else [])
    aff = jnp.stack(rows, axis=0)
    return jnp.pad(aff, ((0, 8 - aff.shape[0]), (0, 0)))      # 8 sublanes


def _affine_act(y, aff, *, tile_p, out_dtype, vmem_limit):
    Pp, Ctot = y.shape
    return pl.pallas_call(
        _affine_act_kernel,
        out_shape=jax.ShapeDtypeStruct((Pp, Ctot), out_dtype),
        grid=(Pp // tile_p,),
        in_specs=[pl.BlockSpec((tile_p, Ctot), lambda i: (i, 0)),
                  pl.BlockSpec((8, Ctot), lambda i: (0, 0))],
        out_specs=pl.BlockSpec((tile_p, Ctot), lambda i: (i, 0)),
        compiler_params=pltpu.CompilerParams(
            dimension_semantics=("parallel",),
            vmem_limit_bytes=vmem_limit),
    )(y, aff)


def _affine_add_relu(y, aff, identity, *, tile_p, out_dtype, vmem_limit):
    Pp, Ctot = y.shape
    return pl.pallas_call(
        _affine_add_relu_kernel,
        out_shape=jax.ShapeDtypeStruct((Pp, Ctot), out_dtype),
        grid=(Pp // tile_p,),
        in_specs=[pl.BlockSpec((tile_p, Ctot), lambda i: (i, 0)),
                  pl.BlockSpec((8, Ctot), lambda i: (0, 0)),
                  # identity array may be wider (2*Cpad); only block-column 0 is read.
                  pl.BlockSpec((tile_p, Ctot), lambda i: (i, 0))],
        out_specs=pl.BlockSpec((tile_p, Ctot), lambda i: (i, 0)),
        compiler_params=pltpu.CompilerParams(
            dimension_semantics=("parallel",),
            vmem_limit_bytes=vmem_limit),
    )(y, aff, identity)


# --------------------------------- JAX glue ----------------------------------
def _im2col(x_nhwc, kh, kw, stride, padding):
    # TODO(synk): replace with in-kernel implicit im2col (manual-DMA halo tiles)
    # to remove the kh*kw HBM read amplification of this patch matrix.
    N, H, W, C = x_nhwc.shape
    xp = jnp.pad(x_nhwc, ((0, 0), (padding, padding), (padding, padding), (0, 0)))
    Ho = (H + 2 * padding - kh) // stride + 1
    Wo = (W + 2 * padding - kw) // stride + 1
    cols = []
    for i in range(kh):
        for j in range(kw):
            cols.append(xp[:, i:i + (Ho - 1) * stride + 1:stride,
                           j:j + (Wo - 1) * stride + 1:stride, :])
    p = jnp.concatenate(cols, axis=-1)                  # [N, Ho, Wo, kh*kw*C]
    return p.reshape(N * Ho * Wo, kh * kw * C), Ho, Wo


def residual_block_forward(x_nchw, params, stride, kernel_size, *,
                           tile_p=512, compute_dtype=jnp.bfloat16):
    padding = _padding_for(kernel_size)
    vmem = _vmem_limit_bytes()
    x = jnp.transpose(x_nchw, (0, 2, 3, 1))             # NCHW -> NHWC
    N, H, W, Cin = x.shape
    Cout = params["conv1_w"].shape[0]
    Cpad = _round_up(Cout, 128)
    has_ds = "ds_w" in params

    # Stage-1 lane layout: pack the fused 1x1 downsample into spare lanes of the
    # same 128-lane block when it fits (ds lanes [0,Cout), conv1 lanes [c1,c1+Cout)).
    if has_ds:
        packed = 2 * Cout <= Cpad
        c1_off = Cpad // 2 if packed else Cpad
        Ctot1 = Cpad if packed else 2 * Cpad
    else:
        c1_off, Ctot1 = 0, Cpad

    # ---- stage 1: conv1 (+ fused downsample) -> BN (+ReLU on conv1 lanes) ----
    xc = x.astype(compute_dtype)                        # bf16 patches halve HBM traffic
    p1, Ho, Wo = _im2col(xc, kernel_size, kernel_size, stride, padding)
    P, K1 = p1.shape

    w1 = jnp.transpose(params["conv1_w"], (2, 3, 1, 0)).reshape(K1, Cout)
    w_comb = jnp.zeros((K1, Ctot1), compute_dtype)
    w_comb = w_comb.at[:, c1_off:c1_off + Cout].set(w1.astype(compute_dtype))
    gamma1 = jnp.zeros((Ctot1,), jnp.float32).at[c1_off:c1_off + Cout].set(params["bn1_g"])
    beta1 = jnp.zeros((Ctot1,), jnp.float32).at[c1_off:c1_off + Cout].set(params["bn1_b"])
    rmask1 = jnp.zeros((Ctot1,), jnp.float32).at[c1_off:c1_off + Cout].set(1.0)
    if has_ds:
        Ho_ds = (H - 1) // stride + 1
        Wo_ds = (W - 1) // stride + 1
        # TODO(synk): bilinear-interpolate identity when spatial shapes mismatch
        # (possible for kernel_size in {4, 8}); not needed for kernel_size=3.
        assert (Ho_ds, Wo_ds) == (Ho, Wo), "interpolate branch not implemented"
        wd = jnp.transpose(params["ds_w"][:, :, 0, 0], (1, 0))      # (Cin, Cout)
        center = (padding * kernel_size + padding) * Cin            # centre-tap rows of p1
        w_comb = w_comb.at[center:center + Cin, 0:Cout].set(wd.astype(compute_dtype))
        gamma1 = gamma1.at[0:Cout].set(params["bnd_g"])
        beta1 = beta1.at[0:Cout].set(params["bnd_b"])

    tp = _effective_tile(P, tile_p)
    y1, stats1 = _conv_matmul(p1, w_comb, tile_p=tp, y_dtype=compute_dtype,
                              vmem_limit=vmem)
    aff1 = _bn_affine(stats1, gamma1, beta1, P, rmask1)
    z1 = _affine_act(y1, aff1, tile_p=tp, out_dtype=compute_dtype, vmem_limit=vmem)

    out1 = z1[:P, c1_off:c1_off + Cout].reshape(N, Ho, Wo, Cout)

    # ---- identity for the residual add ----
    if has_ds:
        identity = z1                    # BN'd ds branch sits in lanes [0,Cout) of block 0
    else:
        # TODO(synk): bilinear-interpolate identity when spatial shapes mismatch.
        assert (H, W) == (Ho, Wo), "interpolate branch not implemented"
        Pp = y1.shape[0]
        identity = jnp.zeros((Pp, Cpad), x.dtype).at[:P, :Cout].set(x.reshape(P, Cin))

    # ---- stage 2: conv2 (3x3, s1, p1) -> BN -> +identity -> ReLU ----
    p2, Ho2, Wo2 = _im2col(out1, 3, 3, 1, 1)
    assert (Ho2, Wo2) == (Ho, Wo)
    K2 = 9 * Cout
    w2 = jnp.transpose(params["conv2_w"], (2, 3, 1, 0)).reshape(K2, Cout)
    w2p = jnp.zeros((K2, Cpad), compute_dtype).at[:, :Cout].set(w2.astype(compute_dtype))
    gamma2 = jnp.zeros((Cpad,), jnp.float32).at[:Cout].set(params["bn2_g"])
    beta2 = jnp.zeros((Cpad,), jnp.float32).at[:Cout].set(params["bn2_b"])

    y2, stats2 = _conv_matmul(p2, w2p, tile_p=tp, y_dtype=compute_dtype,
                              vmem_limit=vmem)
    aff2 = _bn_affine(stats2, gamma2, beta2, P)
    out = _affine_add_relu(y2, aff2, identity, tile_p=tp, out_dtype=jnp.float32,
                           vmem_limit=vmem)

    out = out[:P, :Cout].reshape(N, Ho, Wo, Cout)
    return jnp.transpose(out, (0, 3, 1, 2))             # NHWC -> NCHW


# --------------------------- pure-JAX reference ------------------------------
def _bn_train_ref(x, g, b):
    mean = jnp.mean(x, axis=(0, 2, 3), keepdims=True)
    var = jnp.mean((x - mean) ** 2, axis=(0, 2, 3), keepdims=True)
    return (x - mean) * lax.rsqrt(var + EPS) * g.reshape(1, -1, 1, 1) + b.reshape(1, -1, 1, 1)


def _conv_ref(x, w, b, stride, padding):
    y = lax.conv_general_dilated(x, w, (stride, stride),
                                 [(padding, padding), (padding, padding)],
                                 dimension_numbers=("NCHW", "OIHW", "NCHW"))
    return y + b.reshape(1, -1, 1, 1)


def reference_forward(x, params, stride, kernel_size):
    padding = _padding_for(kernel_size)
    out = _conv_ref(x, params["conv1_w"], params["conv1_b"], stride, padding)
    out = jnp.maximum(_bn_train_ref(out, params["bn1_g"], params["bn1_b"]), 0.0)
    out = _conv_ref(out, params["conv2_w"], params["conv2_b"], 1, 1)
    out = _bn_train_ref(out, params["bn2_g"], params["bn2_b"])
    if "ds_w" in params:
        identity = _conv_ref(x, params["ds_w"], params["ds_b"], stride, 0)
        identity = _bn_train_ref(identity, params["bnd_g"], params["bnd_b"])
    else:
        identity = x
    return jnp.maximum(out + identity, 0.0)


# ----------------------------------- main ------------------------------------
if __name__ == "__main__":
    in_ch, out_ch, stride, k = 4, 8, 2, 3
    key = jax.random.PRNGKey(0)
    keys = jax.random.split(key, 8)

    x = jax.random.normal(keys[0], (2, in_ch, 16, 16), jnp.float32)

    def _u(kk, shape, fan_in):  # PyTorch-style uniform(-1/sqrt(fan_in), +)
        bound = 1.0 / float(fan_in) ** 0.5
        return jax.random.uniform(kk, shape, jnp.float32, -bound, bound)

    params = {
        "conv1_w": _u(keys[1], (out_ch, in_ch, k, k), in_ch * k * k),
        "conv1_b": _u(keys[2], (out_ch,), in_ch * k * k),
        "bn1_g": jnp.ones((out_ch,), jnp.float32),
        "bn1_b": jnp.zeros((out_ch,), jnp.float32),
        "conv2_w": _u(keys[3], (out_ch, out_ch, 3, 3), out_ch * 9),
        "conv2_b": _u(keys[4], (out_ch,), out_ch * 9),
        "bn2_g": jnp.ones((out_ch,), jnp.float32),
        "bn2_b": jnp.zeros((out_ch,), jnp.float32),
    }
    if stride != 1 or in_ch != out_ch:  # downsample branch (1x1 conv + BN)
        params.update({
            "ds_w": _u(keys[5], (out_ch, in_ch, 1, 1), in_ch),
            "ds_b": _u(keys[6], (out_ch,), in_ch),
            "bnd_g": jnp.ones((out_ch,), jnp.float32),
            "bnd_b": jnp.zeros((out_ch,), jnp.float32),
        })

    ref = reference_forward(x, params, stride, k)

    # f32 path: tight check (tile_p=64 so the toy P=128 exercises the multi-tile
    # partial-stats path).
    out_f32 = jax.block_until_ready(
        residual_block_forward(x, params, stride, k, tile_p=64,
                               compute_dtype=jnp.float32))
    assert out_f32.shape == ref.shape, (out_f32.shape, ref.shape)
    err32 = float(jnp.max(jnp.abs(out_f32 - ref)))
    assert jnp.allclose(out_f32, ref, atol=1e-4, rtol=1e-4), err32

    # bf16 MXU path (production default): tolerance gated on dtype.
    out_bf16 = jax.block_until_ready(
        residual_block_forward(x, params, stride, k, tile_p=64,
                               compute_dtype=jnp.bfloat16))
    assert out_bf16.shape == ref.shape, (out_bf16.shape, ref.shape)
    err16 = float(jnp.max(jnp.abs(out_bf16 - ref)))
    assert jnp.allclose(out_bf16, ref, atol=1e-1, rtol=1e-1), err16

    print("KERNEL_OK")
</pallas_src>

<mosaic_0001>
module attributes {stable_mosaic.version = 11 : i64} {
  func.func @_matmul_stats_kernel(%arg0: i32, %arg1: memref<64x36xf32, #tpu.memory_space<vmem>>, %arg2: memref<36x128xf32, #tpu.memory_space<vmem>>, %arg3: memref<64x128xf32, #tpu.memory_space<vmem>>, %arg4: memref<8x128xf32, #tpu.memory_space<vmem>>) attributes {dimension_semantics = [#tpu.dimension_semantics<parallel>], iteration_bounds = array<i64: 2>, scalar_prefetch = 0 : i64, scratch_operands = 0 : i64, tpu.core_type = #tpu.core_type<tc>, window_params = [{transform_indices = @transform_0, window_bounds = array<i64: 64, 36>}, {pipeline_mode = #tpu.pipeline_mode<synchronous>, transform_indices = @transform_1, window_bounds = array<i64: 36, 128>}, {transform_indices = @transform_2, window_bounds = array<i64: 64, 128>}, {transform_indices = @transform_3, window_bounds = array<i64: 8, 128>}]} {
    %c0 = arith.constant 0 : index
    %c0_0 = arith.constant 0 : index
    %0 = vector.load %arg1[%c0, %c0_0] : memref<64x36xf32, #tpu.memory_space<vmem>>, vector<64x36xf32>
    %c0_1 = arith.constant 0 : index
    %c0_2 = arith.constant 0 : index
    %1 = vector.load %arg2[%c0_1, %c0_2] : memref<36x128xf32, #tpu.memory_space<vmem>>, vector<36x128xf32>
    %cst = arith.constant dense<0.000000e+00> : vector<64x128xf32>
    %2 = tpu.matmul %0, %1, %cst {dimension_numbers = #tpu.dot_dimension_numbers<[1], [0], [0], [1], [0, 0, 1, 1], [], []>} : vector<64x36xf32>, vector<36x128xf32>, vector<64x128xf32> -> vector<64x128xf32>
    %c0_3 = arith.constant 0 : index
    %c0_4 = arith.constant 0 : index
    %3 = vector.load %arg3[%c0_3, %c0_4] : memref<64x128xf32, #tpu.memory_space<vmem>>, vector<64x128xf32>
    tpu.vector_store %arg3[%c0_3, %c0_4], %2 {strides = array<i32>} : memref<64x128xf32, #tpu.memory_space<vmem>>, vector<64x128xf32>,
    %cst_5 = arith.constant 0.000000e+00 : f32
    %4 = vector.broadcast %cst_5 : f32 to vector<8x128xf32>
    %c0_6 = arith.constant 0 : index
    %c0_7 = arith.constant 0 : index
    %5 = vector.load %arg4[%c0_6, %c0_7] : memref<8x128xf32, #tpu.memory_space<vmem>>, vector<8x128xf32>
    tpu.vector_store %arg4[%c0_6, %c0_7], %4 {strides = array<i32>} : memref<8x128xf32, #tpu.memory_space<vmem>>, vector<8x128xf32>,
    %cst_8 = arith.constant dense<0.000000e+00> : vector<128xf32>
    %6 = vector.multi_reduction <add>, %2, %cst_8 [0] : vector<64x128xf32> to vector<128xf32>
    %7 = vector.shape_cast %6 : vector<128xf32> to vector<1x128xf32>
    %c0_9 = arith.constant 0 : index
    %c0_10 = arith.constant 0 : index
    %8 = vector.load %arg4[%c0_9, %c0_10] : memref<8x128xf32, #tpu.memory_space<vmem>>, vector<1x128xf32>
    tpu.vector_store %arg4[%c0_9, %c0_10], %7 {strides = array<i32>} : memref<8x128xf32, #tpu.memory_space<vmem>>, vector<1x128xf32>,
    %9 = arith.mulf %2, %2 : vector<64x128xf32>
    %cst_11 = arith.constant dense<0.000000e+00> : vector<128xf32>
    %10 = vector.multi_reduction <add>, %9, %cst_11 [0] : vector<64x128xf32> to vector<128xf32>
    %11 = vector.shape_cast %10 : vector<128xf32> to vector<1x128xf32>
    %c1 = arith.constant 1 : index
    %c0_12 = arith.constant 0 : index
    %12 = vector.load %arg4[%c1, %c0_12] : memref<8x128xf32, #tpu.memory_space<vmem>>, vector<1x128xf32>
    tpu.vector_store %arg4[%c1, %c0_12], %11 {strides = array<i32>} : memref<8x128xf32, #tpu.memory_space<vmem>>, vector<1x128xf32>,
    return
  }
  func.func @transform_0(%arg0: i32) -> (i32, i32) {
    %c0_i32 = arith.constant 0 : i32
    %c0_i32_0 = arith.constant 0 : i32
    return %arg0, %c0_i32 : i32, i32
  }
  func.func @transform_1(%arg0: i32) -> (i32, i32) {
    %c0_i32 = arith.constant 0 : i32
    %c0_i32_0 = arith.constant 0 : i32
    %c0_i32_1 = arith.constant 0 : i32
    return %c0_i32, %c0_i32_0 : i32, i32
  }
  func.func @transform_2(%arg0: i32) -> (i32, i32) {
    %c0_i32 = arith.constant 0 : i32
    %c0_i32_0 = arith.constant 0 : i32
    return %arg0, %c0_i32 : i32, i32
  }
  func.func @transform_3(%arg0: i32) -> (i32, i32) {
    %c0_i32 = arith.constant 0 : i32
    %c0_i32_0 = arith.constant 0 : i32
    return %arg0, %c0_i32 : i32, i32
  }
}

</mosaic_0001>

<llo_original>
// kernel: tpu_custom_call.1
$region0: #{tpu_custom_call.1}
  #allocation0 [shape = 'u32[]', space=smem, size = 0x4, offset = 0x4, fixed_abs, tag = 'smem constant byte address 0x4 - core index']
  #allocation1 [shape = 'u32[144,128]{1,0:T(1,128)}', space=vmem, size = 0x12000, scoped, tag = 'internal scratch']
  %s0 = inlined_call_operand.hbm [shape: f32[128,36], index: 0, kind: input, shape index: {}]
  %s1 = inlined_call_operand.hbm [shape: f32[36,128], index: 1, kind: input, shape index: {}]
  %s2 = inlined_call_operand.hbm [shape: f32[128,128], index: 2, kind: output, shape index: {0}]
  %s3 = inlined_call_operand.hbm [shape: f32[16,128], index: 3, kind: output, shape index: {1}]
  %4 = xla_tuple %s2, %s3
  %s5 = sld [smem:[#allocation0]]
  $region57: #{tpu_custom_call.1} parent=0
    _
  %s7 = ssub.s32 1, %s5
  %s8 = scalar_select 0, %s7, %s5
  $region1: #{tpu_custom_call.1} parent=0
    #allocation2 [shape = 'u8[65536]{0}', space=vmem, size = 0x10000, scoped, tag = 'input window, operand 0']
    #allocation3 [shape = 's32[2]{0}', space=sflag, size = 0x8, scoped, tag = 'scoped memory for tpu_custom_call.1']
    #allocation4 [shape = 's32[2]{0}', space=sflag, size = 0x8, scoped, tag = 'scoped memory for tpu_custom_call.1']
    #allocation5 [shape = 'u8[20480]{0}', space=vmem, size = 0x5000, scoped, tag = 'input window, operand 1, single buffered']
    #allocation6 [shape = 's32[1]{0}', space=sflag, size = 0x4, scoped, tag = 'scoped memory for tpu_custom_call.1']
    #allocation7 [shape = 'u8[65536]{0}', space=vmem, size = 0x10000, scoped, tag = 'output window, operand 0']
    #allocation8 [shape = 'u8[8192]{0}', space=vmem, size = 0x2000, scoped, tag = 'output window, operand 1']
    #allocation9 [shape = 's32[2]{0}', space=sflag, size = 0x8, scoped, tag = 'scoped memory for tpu_custom_call.1']
    %9 = vsyncpa [#allocation3], 0
    %s10 = scalar_lea.sflag [#allocation3], 1
    %11 = vsyncpa %s10, 0
    %12 = vsyncpa [#allocation6], 0
    %13 = vsyncpa [#allocation4], 0
    %s14 = scalar_lea.sflag [#allocation4], 1
    %15 = vsyncpa %s14, 0
    %16 = vsyncpa [#allocation9], 0
    %s17 = scalar_lea.sflag [#allocation9], 1
    %18 = vsyncpa %s17, 0
    loop: start=0, step=1, limit=4
    $region2: #{tpu_custom_call.1} parent=1 // loop_pre_header
      _
    $region3: #{tpu_custom_call.1} parent=1 // loop_header
      %s20 = sphi 0, %s24
      %p21 = scmp.ge.s32.totalorder %s20, 4
      %s30 = sphi 0, %s32
      %s33 = sphi 0, %s30
      %s34 = sphi 0, %s33
      %s50 = sphi 0, %s34
      %s54 = sphi 0, %s54
      %s56 = sphi 0, %s54
      %s57 = sphi 0, %s56
      %s71 = sphi 0, %s57
      %s77 = sphi 0, %s79
      %s80 = sphi 0, %s77
      %s81 = sphi 0, %s80
      %s97 = sphi 0, %s81
      %s103 = sphi 0, %s105
      %s106 = sphi 0, %s103
      %s107 = sphi 0, %s106
      %s123 = sphi 0, %s107
    $region4: #{tpu_custom_call.1} parent=1 // loop_header_branch
      %23 = sbr.rel (%p21) target = $region8
    $region5: #{tpu_custom_call.1} parent=1 // loop_body
      %s25 = ssub.s32 %s20, 1
      %s26 = ssub.s32 %s20, 2
      %s27 = sadd.s32 %s20, 1
      %s28 = ssub.s32 %s20, %s27
      %p29 = scmp.eq.s32.totalorder %s28, 0
      %s31 = sadd.s32 %s30, 1
      %s32 = scalar_select %p29, %s30, %s31
      %p35 = pneg %p29
      %p36 = scmp.eq.s32.totalorder %s20, 1
      %p37 = por %p35, %p36
      %p38 = scmp.ne.s32.totalorder %s30, %s33
      %p39 = scmp.eq.s32.totalorder %s20, 0
      %p40 = por %p38, %p39
      %p41 = scmp.ne.s32.totalorder %s30, %s33
      %p42 = scmp.eq.s32.totalorder %s25, 1
      %p43 = por %p41, %p42
      %p44 = scmp.ne.s32.totalorder %s33, %s34
      %p45 = scmp.eq.s32.totalorder %s25, 0
      %p46 = por %p44, %p45
      %p47 = scmp.ne.s32.totalorder %s33, %s34
      %p48 = scmp.eq.s32.totalorder %s26, 1
      %p49 = por %p47, %p48
      %p51 = scmp.ne.s32.totalorder %s34, %s50
      %p52 = scmp.eq.s32.totalorder %s26, 0
      %p53 = por %p51, %p52
      %s55 = sadd.s32 %s54, 1
      %p58 = scmp.eq.s32.totalorder %s20, 1
      %p59 = scmp.ne.s32.totalorder %s54, %s56
      %p60 = scmp.eq.s32.totalorder %s20, 0
      %p61 = por %p59, %p60
      %p62 = scmp.ne.s32.totalorder %s54, %s56
      %p63 = scmp.eq.s32.totalorder %s25, 1
      %p64 = por %p62, %p63
      %p65 = scmp.ne.s32.totalorder %s56, %s57
      %p66 = scmp.eq.s32.totalorder %s25, 0
      %p67 = por %p65, %p66
      %p68 = scmp.ne.s32.totalorder %s56, %s57
      %p69 = scmp.eq.s32.totalorder %s26, 1
      %p70 = por %p68, %p69
      %p72 = scmp.ne.s32.totalorder %s57, %s71
      %p73 = scmp.eq.s32.totalorder %s26, 0
      %p74 = por %p72, %p73
      %s75 = ssub.s32 %s20, %s27
      %p76 = scmp.eq.s32.totalorder %s75, 0
      %s78 = sadd.s32 %s77, 1
      %s79 = scalar_select %p76, %s77, %s78
      %p82 = pneg %p76
      %p83 = scmp.eq.s32.totalorder %s20, 1
      %p84 = por %p82, %p83
      %p85 = scmp.ne.s32.totalorder %s77, %s80
      %p86 = scmp.eq.s32.totalorder %s20, 0
      %p87 = por %p85, %p86
      %p88 = scmp.ne.s32.totalorder %s77, %s80
      %p89 = scmp.eq.s32.totalorder %s25, 1
      %p90 = por %p88, %p89
      %p91 = scmp.ne.s32.totalorder %s80, %s81
      %p92 = scmp.eq.s32.totalorder %s25, 0
      %p93 = por %p91, %p92
      %p94 = scmp.ne.s32.totalorder %s80, %s81
      %p95 = scmp.eq.s32.totalorder %s26, 1
      %p96 = por %p94, %p95
      %p98 = scmp.ne.s32.totalorder %s81, %s97
      %p99 = scmp.eq.s32.totalorder %s26, 0
      %p100 = por %p98, %p99
      %s101 = ssub.s32 %s20, %s27
      %p102 = scmp.eq.s32.totalorder %s101, 0
      %s104 = sadd.s32 %s103, 1
      %s105 = scalar_select %p102, %s103, %s104
      %p108 = pneg %p102
      %p109 = scmp.eq.s32.totalorder %s20, 1
      %p110 = por %p108, %p109
      %p111 = scmp.ne.s32.totalorder %s103, %s106
      %p112 = scmp.eq.s32.totalorder %s20, 0
      %p113 = por %p111, %p112
      %p114 = scmp.ne.s32.totalorder %s103, %s106
      %p115 = scmp.eq.s32.totalorder %s25, 1
      %p116 = por %p114, %p115
      %p117 = scmp.ne.s32.totalorder %s106, %s107
      %p118 = scmp.eq.s32.totalorder %s25, 0
      %p119 = por %p117, %p118
      %p120 = scmp.ne.s32.totalorder %s106, %s107
      %p121 = scmp.eq.s32.totalorder %s26, 1
      %p122 = por %p120, %p121
      %p124 = scmp.ne.s32.totalorder %s107, %s123
      %p125 = scmp.eq.s32.totalorder %s26, 0
      %p126 = por %p124, %p125
      %p127 = scmp.le.s32.totalorder 1, %s20
      %p128 = scmp.lt.s32.totalorder %s20, 3
      %p129 = pnand %p127, %p128
      %p130 = pneg %p129
      // Predicated region
      $region9: #{tpu_custom_call.1} parent=5 // pred_check
        _
      $region10: #{tpu_custom_call.1} parent=5 // pred_check_branch
        %132 = sbr.rel (%p129) target = $region12
      $region11: #{tpu_custom_call.1} parent=5 // pred_region
        %s133 = ssub.s32 %s20, 1
        // Predicated region
        $region13: #{tpu_custom_call.1} parent=11 // pred_check
          %p134 = pneg %p67
        $region14: #{tpu_custom_call.1} parent=11 // pred_check_branch
          %136 = sbr.rel (%p134) target = $region16
        $region15: #{tpu_custom_call.1} parent=11 // pred_region
          %s138 = ssub.s32 640, 640
          %139 = vsyncadd [#allocation6], %s138
          %s140 = sshll.u32 [#allocation5], 4
          %s141 = int_to_ptr.vmem [resolvable:$true] %s140
          %146 = dma.hbm_to_vmem [thread:$0]  %s1, 640, %s141, [#allocation6], 128, 128, 8
        $region16: #{tpu_custom_call.1} parent=11 // pred_fallthru
          _
      $region12: #{tpu_custom_call.1} parent=5 // pred_fallthru
        _
      %p147 = scmp.lt.s32.totalorder %s20, 2
      // Predicated region
      $region17: #{tpu_custom_call.1} parent=5 // pred_check
        %p148 = pneg %p147
      $region18: #{tpu_custom_call.1} parent=5 // pred_check_branch
        %150 = sbr.rel (%p148) target = $region20
      $region19: #{tpu_custom_call.1} parent=5 // pred_region
        // Predicated region
        $region21: #{tpu_custom_call.1} parent=19 // pred_check
          %p151 = pneg %p40
        $region22: #{tpu_custom_call.1} parent=19 // pred_check_branch
          %153 = sbr.rel (%p151) target = $region24
        $region23: #{tpu_custom_call.1} parent=19 // pred_region
          %s154 = sand.u32 %s30, 1
          %s155 = scalar_lea.sflag [#allocation3], %s154
          %s156 = sand.u32 %s30, 1
          %s157 = smul.addr %s156, 64
          %s158 = scalar_lea.vmem [#allocation2], %s157
          %s159 = smul.u32 8, %s20
          %s161 = ssub.s32 1024, 1024
          %162 = vsyncadd %s155, %s161
          %s163 = smul.addr %s159, 128
          %s164 = scalar_lea.hbm %s0, %s163
          %s165 = sshll.u32 %s158, 4
          %s166 = int_to_ptr.vmem [resolvable:$true] %s165
          %171 = dma.hbm_to_vmem [thread:$0]  %s164, 1024, %s166, %s155, 128, 128, 8
        $region24: #{tpu_custom_call.1} parent=19 // pred_fallthru
          _
      $region20: #{tpu_custom_call.1} parent=5 // pred_fallthru
        _
      %p172 = scmp.le.s32.totalorder 1, %s20
      %p173 = scmp.lt.s32.totalorder %s20, 3
      %p174 = pnand %p172, %p173
      %p175 = pneg %p174
      // Predicated region
      $region25: #{tpu_custom_call.1} parent=5 // pred_check
        _
      $region26: #{tpu_custom_call.1} parent=5 // pred_check_branch
        %177 = sbr.rel (%p174) target = $region28
      $region27: #{tpu_custom_call.1} parent=5 // pred_region
        %s178 = ssub.s32 %s20, 1
        %s179 = sand.u32 %s33, 1
        %s180 = scalar_lea.sflag [#allocation3], %s179
        %s181 = sand.u32 %s33, 1
        %s182 = smul.addr %s181, 64
        %s183 = scalar_lea.vmem [#allocation2], %s182
        // Predicated region
        $region29: #{tpu_custom_call.1} parent=27 // pred_check
          %p184 = pneg %p46
        $region30: #{tpu_custom_call.1} parent=27 // pred_check_branch
          %186 = sbr.rel (%p184) target = $region32
        $region31: #{tpu_custom_call.1} parent=27 // pred_region
          %187 = dma.done %s180, 1024
        $region32: #{tpu_custom_call.1} parent=27 // pred_fallthru
          _
        // Predicated region
        $region33: #{tpu_custom_call.1} parent=27 // pred_check
          %p188 = pneg %p67
        $region34: #{tpu_custom_call.1} parent=27 // pred_check_branch
          %190 = sbr.rel (%p188) target = $region36
        $region35: #{tpu_custom_call.1} parent=27 // pred_region
          %191 = dma.done [#allocation6], 640
        $region36: #{tpu_custom_call.1} parent=27 // pred_fallthru
          _
        %s192 = sand.u32 %s33, 1
        %s193 = scalar_lea.sflag [#allocation3], %s192
        %s194 = sand.u32 %s33, 1
        %s195 = smul.addr %s194, 64
        %s196 = scalar_lea.vmem [#allocation2], %s195
        %p197 = pneg %p46
        %p198 = pneg %p43
        %p199 = pneg %p67
        %p200 = pneg %p64
        %p201 = pneg %p93
        %p202 = pneg %p90
        %s203 = sand.u32 %s80, 1
        %s204 = scalar_lea.sflag [#allocation4], %s203
        %s205 = sand.u32 %s80, 1
        %s206 = smul.addr %s205, 64
        %s207 = scalar_lea.vmem [#allocation7], %s206
        %p208 = pneg %p119
        %p209 = pneg %p116
        %s210 = sand.u32 %s106, 1
        %s211 = scalar_lea.sflag [#allocation9], %s210
        %s212 = sand.u32 %s106, 1
        %s213 = smul.addr %s212, 8
        %s214 = scalar_lea.vmem [#allocation8], %s213
        %s215 = smul.u32 8, %s25
        %s216 = smul.u32 8, %s25
        %v217 = vld [vmem:[%s183] sm:$0xff]
        %v218 = vld [vmem:[%s183 + $0x8] sm:$0xff]
        %v219 = vld [vmem:[%s183 + $0x10] sm:$0xff]
        %v220 = vld [vmem:[%s183 + $0x18] sm:$0xff]
        %v221 = vld [vmem:[%s183 + $0x20] sm:$0xff]
        %v222 = vld [vmem:[%s183 + $0x28] sm:$0xff]
        %v223 = vld [vmem:[%s183 + $0x30] sm:$0xff]
        %v224 = vld [vmem:[%s183 + $0x38] sm:$0xff]
        %v225 = vld [vmem:[#allocation5] sm:$0xff]
        %v226 = vld [vmem:[#allocation5 + $0x8] sm:$0xff]
        %v227 = vld [vmem:[#allocation5 + $0x10] sm:$0xff]
        %v228 = vld [vmem:[#allocation5 + $0x18] sm:$0xff]
        %v229 = vld [vmem:[#allocation5 + $0x20] sm:$0xf]
        %vm230 = vcmask 293888
        %v232 = vsel %vm230, %v217, 0
        %v235 = vsel %vm230, %v218, 0
        %v238 = vsel %vm230, %v219, 0
        %v241 = vsel %vm230, %v220, 0
        %v244 = vsel %vm230, %v221, 0
        %v247 = vsel %vm230, %v222, 0
        %v250 = vsel %vm230, %v223, 0
        %v253 = vsel %vm230, %v224, 0
        %vm255 = vcmask 1043456
        %v257 = vsel %vm255, %v229, 0
        %259 = vmatprep.subr.mxu0 0.0
        %260 = vmatpush1.msra.mxu0 %v225
        %261 = vmatprep.subr.mxu0 0.0
        %262 = vmatpush1.msra.mxu0 %v226
        %263 = vmatprep.subr.mxu0 0.0
        %264 = vmatpush1.msra.mxu0 %v227
        %265 = vmatprep.subr.mxu0 0.0
        %266 = vmatpush1.msra.mxu0 %v228
        %267 = vmatprep.subr.mxu0 0.0
        %268 = vmatpush1.msra.mxu0 %v257
        %269 = vmatprep.subr.mxu0 0.0
        %270 = vmatpush1.msra.mxu0 0.0
        %271 = vmatprep.subr.mxu0 0.0
        %272 = vmatpush1.msra.mxu0 0.0
        %273 = vmatprep.subr.mxu0 0.0
        %274 = vmatpush1.msra.mxu0 0.0
        %275 = vmatprep.subr.mxu0 0.0
        %276 = vmatpush1.msra.mxu0 0.0
        %277 = vmatprep.subr.mxu0 0.0
        %278 = vmatpush1.msra.mxu0 0.0
        %279 = vmatprep.subr.mxu0 0.0
        %280 = vmatpush1.msra.mxu0 0.0
        %281 = vmatprep.subr.mxu0 0.0
        %282 = vmatpush1.msra.mxu0 0.0
        %283 = vmatprep.subr.mxu0 0.0
        %284 = vmatpush1.msra.mxu0 0.0
        %285 = vmatprep.subr.mxu0 0.0
        %286 = vmatpush1.msra.mxu0 0.0
        %287 = vmatprep.subr.mxu0 0.0
        %288 = vmatpush1.msra.mxu0 0.0
        %289 = vmatprep.subr.mxu0 0.0
        %290 = vmatpush1.msra.mxu0 0.0
        %291 = vmatprep.subr.mxu0 0.0
        %292 = vmatpush1.msra.mxu0 0.0
        %293 = vmatprep.subr.mxu0 0.0
        %294 = vmatpush1.msra.mxu0 0.0
        %295 = vmatprep.subr.mxu0 0.0
        %296 = vmatpush1.msra.mxu0 0.0
        %297 = vmatprep.subr.mxu0 0.0
        %298 = vmatpush1.msra.mxu0 0.0
        %299 = vmatprep.subr.mxu0 0.0
        %300 = vmatpush1.msra.mxu0 0.0
        %301 = vmatprep.subr.mxu0 0.0
        %302 = vmatpush1.msra.mxu0 0.0
        %303 = vmatprep.subr.mxu0 0.0
        %304 = vmatpush1.msra.mxu0 0.0
        %305 = vmatprep.subr.mxu0 0.0
        %306 = vmatpush1.msra.mxu0 0.0
        %307 = vmatprep.subr.mxu0 0.0
        %308 = vmatpush1.msra.mxu0 0.0
        %309 = vmatprep.subr.mxu0 0.0
        %310 = vmatpush1.msra.mxu0 0.0
        %311 = vmatprep.subr.mxu0 0.0
        %312 = vmatpush1.msra.mxu0 0.0
        %313 = vmatprep.subr.mxu0 0.0
        %314 = vmatpush1.msra.mxu0 0.0
        %315 = vmatprep.subr.mxu0 0.0
        %316 = vmatpush1.msra.mxu0 0.0
        %317 = vmatprep.subr.mxu0 0.0
        %318 = vmatpush1.msra.mxu0 0.0
        %319 = vmatprep.subr.mxu0 0.0
        %320 = vmatpush1.msra.mxu0 0.0
        %321 = vmatprep.subr.mxu0 0.0
        %322 = vmatpush1.msra.mxu0 0.0
        %323 = vmatprep.mubr.f32.mxu0 0.0
        %324 = vmatmul.mubr.f32.gmra.mrb[0].mxu0 %v232
        %v325 = vpop.f32.mrb[0].mxu0
        %v326 = vadd.f32 0.0, %v325
        %v327 = vpop.f32.mrb[0].mxu0
        %328 = vmatprep.mubr.f32.mxu0 0.0
        %329 = vmatmul.mubr.f32.gmra.mrb[0].mxu0 %v235
        %v330 = vpop.f32.mrb[0].mxu0
        %v331 = vadd.f32 0.0, %v330
        %v332 = vpop.f32.mrb[0].mxu0
        %333 = vmatprep.mubr.f32.mxu0 0.0
        %334 = vmatmul.mubr.f32.gmra.mrb[0].mxu0 %v238
        %v335 = vpop.f32.mrb[0].mxu0
        %v336 = vadd.f32 0.0, %v335
        %v337 = vpop.f32.mrb[0].mxu0
        %338 = vmatprep.mubr.f32.mxu0 0.0
        %339 = vmatmul.mubr.f32.gmra.mrb[0].mxu0 %v241
        %v340 = vpop.f32.mrb[0].mxu0
        %v341 = vadd.f32 0.0, %v340
        %v342 = vpop.f32.mrb[0].mxu0
        %343 = vmatprep.mubr.f32.mxu0 0.0
        %344 = vmatmul.mubr.f32.gmra.mrb[0].mxu0 %v244
        %v345 = vpop.f32.mrb[0].mxu0
        %v346 = vadd.f32 0.0, %v345
        %v347 = vpop.f32.mrb[0].mxu0
        %348 = vmatprep.mubr.f32.mxu0 0.0
        %349 = vmatmul.mubr.f32.gmra.mrb[0].mxu0 %v247
        %v350 = vpop.f32.mrb[0].mxu0
        %v351 = vadd.f32 0.0, %v350
        %v352 = vpop.f32.mrb[0].mxu0
        %353 = vmatprep.mubr.f32.mxu0 0.0
        %354 = vmatmul.mubr.f32.gmra.mrb[0].mxu0 %v250
        %v355 = vpop.f32.mrb[0].mxu0
        %v356 = vadd.f32 0.0, %v355
        %v357 = vpop.f32.mrb[0].mxu0
        %358 = vmatprep.mubr.f32.mxu0 0.0
        %359 = vmatmul.mubr.f32.gmra.mrb[0].mxu0 %v253
        %v360 = vpop.f32.mrb[0].mxu0
        %v361 = vadd.f32 0.0, %v360
        %v362 = vpop.f32.mrb[0].mxu0
        %363 = vdwg.mxu0
        %364 = vst [vmem:[%s207] sm:$0xff] %v326
        %365 = vst [vmem:[%s207 + $0x8] sm:$0xff] %v331
        %366 = vst [vmem:[%s207 + $0x10] sm:$0xff] %v336
        %367 = vst [vmem:[%s207 + $0x18] sm:$0xff] %v341
        %368 = vst [vmem:[%s207 + $0x20] sm:$0xff] %v346
        %369 = vst [vmem:[%s207 + $0x28] sm:$0xff] %v351
        %370 = vst [vmem:[%s207 + $0x30] sm:$0xff] %v356
        %371 = vst [vmem:[%s207 + $0x38] sm:$0xff] %v361
        %372 = vst [vmem:[%s214] sm:$0xff] 0.0
        %v373 = vadd.f32 %v326, %v331
        %v374 = vadd.f32 %v373, %v336
        %v375 = vadd.f32 %v374, %v341
        %v376 = vadd.f32 %v375, %v346
        %v377 = vadd.f32 %v376, %v351
        %v378 = vadd.f32 %v377, %v356
        %v379 = vadd.f32 %v378, %v361
        %v380 = vrot.slane %v379, 4
        %v381 = vadd.f32 %v379, %v380
        %v382 = vrot.slane %v381, 2
        %v383 = vadd.f32 %v381, %v382
        %v384 = vrot.slane %v383, 1
        %v385 = vadd.f32 %v383, %v384
        %386 = vst [vmem:[%s214] sm:$0x1] %v385
        %v387 = vmul.f32 %v326, %v326
        %v388 = vmul.f32 %v331, %v331
        %v389 = vmul.f32 %v336, %v336
        %v390 = vmul.f32 %v341, %v341
        %v391 = vmul.f32 %v346, %v346
        %v392 = vmul.f32 %v351, %v351
        %v393 = vmul.f32 %v356, %v356
        %v394 = vmul.f32 %v361, %v361
        %v395 = vadd.f32 %v387, %v388
        %v396 = vadd.f32 %v395, %v389
        %v397 = vadd.f32 %v396, %v390
        %v398 = vadd.f32 %v397, %v391
        %v399 = vadd.f32 %v398, %v392
        %v400 = vadd.f32 %v399, %v393
        %v401 = vadd.f32 %v400, %v394
        %v402 = vrot.slane %v401, 4
        %v403 = vadd.f32 %v401, %v402
        %v404 = vrot.slane %v403, 2
        %v405 = vadd.f32 %v403, %v404
        %v406 = vrot.slane %v405, 1
        %v407 = vadd.f32 %v405, %v406
        %408 = vst [vmem:[%s214 + $0x1] sm:$0x1] %v407
        %s409 = sand.u32 %s80, 1
        %s410 = scalar_lea.sflag [#allocation4], %s409
        %s411 = sand.u32 %s80, 1
        %s412 = smul.addr %s411, 64
        %s413 = scalar_lea.vmem [#allocation7], %s412
        %s414 = sand.u32 %s106, 1
        %s415 = scalar_lea.sflag [#allocation9], %s414
        %s416 = sand.u32 %s106, 1
        %s417 = smul.addr %s416, 8
        %s418 = scalar_lea.vmem [#allocation8], %s417
        // Predicated region
        $region37: #{tpu_custom_call.1} parent=27 // pred_check
          %p419 = pneg %p90
        $region38: #{tpu_custom_call.1} parent=27 // pred_check_branch
          %421 = sbr.rel (%p419) target = $region40
        $region39: #{tpu_custom_call.1} parent=27 // pred_region
          %s422 = smul.u32 8, %s25
          %s424 = ssub.s32 1024, 1024
          %425 = vsyncadd %s410, %s424
          %s426 = smul.addr %s422, 128
          %s427 = scalar_lea.hbm %s2, %s426
          %s428 = sshll.u32 %s413, 4
          %s429 = int_to_ptr.vmem [resolvable:$true] %s428
          %434 = dma.vmem_to_hbm [thread:$0]  %s429, 1024, %s427, %s410, 128, 128, 8
        $region40: #{tpu_custom_call.1} parent=27 // pred_fallthru
          _
        // Predicated region
        $region41: #{tpu_custom_call.1} parent=27 // pred_check
          %p435 = pneg %p116
        $region42: #{tpu_custom_call.1} parent=27 // pred_check_branch
          %437 = sbr.rel (%p435) target = $region44
        $region43: #{tpu_custom_call.1} parent=27 // pred_region
          %s439 = ssub.s32 128, 128
          %440 = vsyncadd %s415, %s439
          %s441 = smul.addr %s25, 128
          %s442 = scalar_lea.hbm %s3, %s441
          %s444 = sshll.u32 %s418, 4
          %s445 = int_to_ptr.vmem [resolvable:$true] %s444
          %447 = dma.vmem_to_hbm [thread:$0]  %s445, 128, %s442, %s415
        $region44: #{tpu_custom_call.1} parent=27 // pred_fallthru
          _
      $region28: #{tpu_custom_call.1} parent=5 // pred_fallthru
        _
      %p448 = scmp.le.s32.totalorder 2, %s20
      // Predicated region
      $region45: #{tpu_custom_call.1} parent=5 // pred_check
        %p449 = pneg %p448
      $region46: #{tpu_custom_call.1} parent=5 // pred_check_branch
        %451 = sbr.rel (%p449) target = $region48
      $region47: #{tpu_custom_call.1} parent=5 // pred_region
        %s452 = ssub.s32 %s20, 2
        // Predicated region
        $region49: #{tpu_custom_call.1} parent=47 // pred_check
          %p453 = pneg %p96
        $region50: #{tpu_custom_call.1} parent=47 // pred_check_branch
          %455 = sbr.rel (%p453) target = $region52
        $region51: #{tpu_custom_call.1} parent=47 // pred_region
          %s456 = sand.u32 %s81, 1
          %s457 = scalar_lea.sflag [#allocation4], %s456
          %s458 = sand.u32 %s81, 1
          %s459 = smul.addr %s458, 64
          %s460 = scalar_lea.vmem [#allocation7], %s459
          %461 = dma.done %s457, 1024
        $region52: #{tpu_custom_call.1} parent=47 // pred_fallthru
          _
        // Predicated region
        $region53: #{tpu_custom_call.1} parent=47 // pred_check
          %p462 = pneg %p122
        $region54: #{tpu_custom_call.1} parent=47 // pred_check_branch
          %464 = sbr.rel (%p462) target = $region56
        $region55: #{tpu_custom_call.1} parent=47 // pred_region
          %s465 = sand.u32 %s107, 1
          %s466 = scalar_lea.sflag [#allocation9], %s465
          %s467 = sand.u32 %s107, 1
          %s468 = smul.addr %s467, 8
          %s469 = scalar_lea.vmem [#allocation8], %s468
          %470 = dma.done %s466, 128
        $region56: #{tpu_custom_call.1} parent=47 // pred_fallthru
          _
      $region48: #{tpu_custom_call.1} parent=5 // pred_fallthru
        _
    $region6: #{tpu_custom_call.1} parent=1 // loop_footer
      %s24 = sadd.s32 1, %s20
    $region7: #{tpu_custom_call.1} parent=1 // loop_footer_branch
      %19 = sbr.rel target = $region3
    $region8: #{tpu_custom_call.1} parent=1 // loop_exit
      _
    %471 = vsyncpa [#allocation3], 1
    %s472 = scalar_lea.sflag [#allocation3], 1
    %473 = vsyncpa %s472, 1
    %474 = vsyncpa [#allocation6], 1
    %475 = vsyncpa [#allocation4], 1
    %s476 = scalar_lea.sflag [#allocation4], 1
    %477 = vsyncpa %s476, 1
    %478 = vsyncpa [#allocation9], 1
    %s479 = scalar_lea.sflag [#allocation9], 1
    %480 = vsyncpa %s479, 1

</llo_original>
